<compile_context>
chip_gen: v6e
topology: v6e:2x2x1
jax: 0.10.0
libtpu: 0.0.40
codegen_flags: <defaults>
</compile_context>

<pallas_src>
import jax
import jax.numpy as jnp
from jax.experimental import pallas as pl
from jax.experimental.pallas import tpu as pltpu

# Module hyperparameters (globals in the reference file; chosen here).
PCA_DIM = 32
OUTPUT_K = 10
HIDDEN = [64, 128, 256, 128, 64]

LANE = 128             # lane width: all internal feature dims padded to this
OUT_PAD = 128          # lane-dense padded width of the final layer
NEG_BIG = -1e30        # bias for padded logits -> exp underflows to exactly 0


def _round_up(x, m):
    return ((x + m - 1) // m) * m


def _cdiv(a, b):
    return (a + b - 1) // b


def _default_act_dtype():
    """bf16 bias/ReLU on bf16-native VPUs (v6e/v7x); f32 on v5e and older."""
    try:
        kind = jax.devices()[0].device_kind.lower()
    except Exception:
        return jnp.bfloat16
    if any(g in kind for g in ("v2", "v3", "v4", "v5")):
        return jnp.float32
    return jnp.bfloat16


def _mlp_kernel(x_ref,
                w1, b1, w2, b2, w3, b3, w4, b4, w5, b5, w6, b6,
                o_ref):
    """Fused 6-layer MLP + ReLU + Softmax(dim=1) on one batch tile."""
    # Hoist all weight/bias reads: one load per ref per grid step.
    ws = (w1[...], w2[...], w3[...], w4[...], w5[...], w6[...])
    bs = (b1[...], b2[...], b3[...], b4[...], b5[...], b6[...])

    h = x_ref[...]  # f32 input tile

    # 5 hidden layers: bf16 MXU operands, f32 accumulation; bias add + ReLU in
    # the bias dtype (bf16 on v6e/v7x -> packed vregs, f32 on v5e).
    for li in range(5):
        z = jnp.dot(h.astype(jnp.bfloat16), ws[li],
                    preferred_element_type=jnp.float32)
        h = jnp.maximum(z.astype(bs[li].dtype) + bs[li], 0)

    # Final (lane-padded) linear, then softmax over the feature axis in f32.
    # Padded columns carry a huge negative bias -> exp == 0, so the reduction
    # over the padded 128-wide axis equals the reduction over the real 10 lanes.
    z = jnp.dot(h.astype(jnp.bfloat16), ws[5],
                preferred_element_type=jnp.float32) + bs[5]
    z = z - jnp.max(z, axis=1, keepdims=True)
    e = jnp.exp(z)
    denom = jnp.sum(e, axis=1, keepdims=True)
    inv = pl.reciprocal(denom, approx=True)   # EUP slot; ~free
    o_ref[...] = (e * inv).astype(o_ref.dtype)


def mlp_forward(x, params, *, block_b=2048, act_dtype=None,
                out_dtype=jnp.float32):
    """x: (B, PCA_DIM) float32. params: list of (w(in,out) f32, b(1,out) f32)."""
    B, D = x.shape
    assert D == PCA_DIM
    if act_dtype is None:
        act_dtype = _default_act_dtype()

    # --- batch tiling -------------------------------------------------------
    B8 = _round_up(B, 8)
    if B8 <= 8:
        TB = B8
    else:
        # At least 2 grid steps so the "parallel" axis actually shards across
        # v7x's two TensorCores; otherwise as big a tile as block_b allows.
        TB = min(_round_up(block_b, 8), _round_up(_cdiv(B8, 2), 8))
    Bp = _round_up(B, TB)
    if Bp != B:
        x = jnp.pad(x, ((0, Bp - B), (0, 0)))
    nb = Bp // TB

    # --- lane-dense parameter padding --------------------------------------
    # Pad every internal feature dim (and the output) up to a multiple of 128.
    # Zero-padded weight columns + zero bias -> padded activations are exactly
    # 0, and zero-padded weight rows consume them exactly -> math unchanged.
    n_layers = len(params)
    dims = [PCA_DIM] + [w.shape[1] for w, _ in params]
    pdims = [PCA_DIM] + [_round_up(d, LANE) for d in dims[1:-1]] + [OUT_PAD]

    flat = []
    for li, (w, b) in enumerate(params):
        pin, pout = pdims[li], pdims[li + 1]
        w = jnp.pad(w, ((0, pin - w.shape[0]), (0, pout - w.shape[1])))
        if li == n_layers - 1:
            b = jnp.pad(b, ((0, 0), (0, pout - b.shape[1])),
                        constant_values=NEG_BIG)
            b = b.astype(jnp.float32)       # softmax tail stays f32
        else:
            b = jnp.pad(b, ((0, 0), (0, pout - b.shape[1])))
            b = b.astype(act_dtype)         # bf16 elementwise on v6e/v7x
        flat.append(w.astype(jnp.bfloat16))  # MXU operand
        flat.append(b)

    # Specs: x/out tiled over batch; weights/biases full blocks with constant
    # index_map -> DMA'd once and kept VMEM-resident across grid steps.
    in_specs = [pl.BlockSpec((TB, PCA_DIM), lambda i: (i, 0))]
    for a in flat:
        in_specs.append(pl.BlockSpec(a.shape, lambda i: (0, 0)))
    out_spec = pl.BlockSpec((TB, OUT_PAD), lambda i: (i, 0))

    # Advisory cost estimate using the padded widths actually executed.
    out_itemsize = jnp.dtype(out_dtype).itemsize
    flops = 2 * Bp * sum(pdims[i] * pdims[i + 1] for i in range(len(pdims) - 1))
    transcendentals = Bp * (OUT_PAD + 1)          # exp per lane + recip per row
    weight_bytes = sum(int(a.size) * a.dtype.itemsize for a in flat)
    bytes_accessed = (Bp * PCA_DIM * 4 + Bp * OUT_PAD * out_itemsize
                      + weight_bytes)

    # Guard rail: only raise the scoped-VMEM limit if a very large block_b
    # would exceed the conservative default (irrelevant at the default tile).
    vmem_need = (2 * (TB * PCA_DIM * 4 + TB * OUT_PAD * out_itemsize)
                 + TB * max(pdims) * (4 + 2) + weight_bytes)
    compiler_kwargs = dict(dimension_semantics=("parallel",))
    if vmem_need > (12 << 20):
        compiler_kwargs["vmem_limit_bytes"] = min(2 * vmem_need, 48 << 20)

    out = pl.pallas_call(
        _mlp_kernel,
        out_shape=jax.ShapeDtypeStruct((Bp, OUT_PAD), out_dtype),
        grid=(nb,),
        in_specs=in_specs,
        out_specs=out_spec,
        compiler_params=pltpu.CompilerParams(**compiler_kwargs),
        cost_estimate=pl.CostEstimate(flops=flops,
                                      transcendentals=transcendentals,
                                      bytes_accessed=bytes_accessed),
    )(x, *flat)

    # Drop batch padding and the lane padding of the final layer.
    return out[:B, :OUTPUT_K]


def init_params(key):
    """Deterministic init matching nn.Linear shapes (weights stored (in, out))."""
    dims = [PCA_DIM] + HIDDEN + [OUTPUT_K]
    params = []
    for i in range(len(dims) - 1):
        fan_in, fan_out = dims[i], dims[i + 1]
        key, kw, kb = jax.random.split(key, 3)
        bound = 1.0 / jnp.sqrt(jnp.float32(fan_in))
        w = jax.random.uniform(kw, (fan_in, fan_out), jnp.float32, -bound, bound)
        b = jax.random.uniform(kb, (1, fan_out), jnp.float32, -bound, bound)
        params.append((w, b))
    return params


def reference_forward(x, params, *, matmul_dtype=jnp.float32):
    """Pure-JAX reference. matmul_dtype=bfloat16 mirrors the kernel's MXU math."""
    h = x
    for i, (w, b) in enumerate(params):
        z = jnp.dot(h.astype(matmul_dtype), w.astype(matmul_dtype),
                    preferred_element_type=jnp.float32) + b
        h = jnp.maximum(z, 0.0) if i < len(params) - 1 else z
    return jax.nn.softmax(h, axis=1)


if __name__ == "__main__":
    key = jax.random.PRNGKey(0)
    key, kx = jax.random.split(key)

    B = 8
    x = jax.random.normal(kx, (B, PCA_DIM), jnp.float32)
    params = init_params(key)

    out = mlp_forward(x, params)
    out = jax.block_until_ready(out)
    assert out.shape == (B, OUTPUT_K)

    # Kernel uses bf16 MXU operands (and bf16 bias/ReLU on v6e/v7x) plus an
    # approximate EUP reciprocal -> compare with relaxed tolerances.
    ref_bf16 = reference_forward(x, params, matmul_dtype=jnp.bfloat16)
    assert jnp.allclose(out, ref_bf16, atol=1e-2, rtol=1e-2)

    # Sanity check against the full-f32 reference (bf16 matmul error budget).
    ref_f32 = reference_forward(x, params, matmul_dtype=jnp.float32)
    assert jnp.allclose(out, ref_f32, atol=5e-2, rtol=5e-2)

    # Softmax rows sum to ~1 (padded lanes underflow to exactly 0; approx recip).
    assert jnp.allclose(jnp.sum(out, axis=1), jnp.ones((B,)), atol=5e-3)

    print("KERNEL_OK")
</pallas_src>

<mosaic_0001>
module attributes {stable_mosaic.version = 11 : i64} {
  func.func @_mlp_kernel(%arg0: i32, %arg1: memref<8x32xf32, #tpu.memory_space<vmem>>, %arg2: memref<32x128xbf16, #tpu.memory_space<vmem>>, %arg3: memref<1x128xbf16, #tpu.memory_space<vmem>>, %arg4: memref<128x128xbf16, #tpu.memory_space<vmem>>, %arg5: memref<1x128xbf16, #tpu.memory_space<vmem>>, %arg6: memref<128x256xbf16, #tpu.memory_space<vmem>>, %arg7: memref<1x256xbf16, #tpu.memory_space<vmem>>, %arg8: memref<256x128xbf16, #tpu.memory_space<vmem>>, %arg9: memref<1x128xbf16, #tpu.memory_space<vmem>>, %arg10: memref<128x128xbf16, #tpu.memory_space<vmem>>, %arg11: memref<1x128xbf16, #tpu.memory_space<vmem>>, %arg12: memref<128x128xbf16, #tpu.memory_space<vmem>>, %arg13: memref<1x128xf32, #tpu.memory_space<vmem>>, %arg14: memref<8x128xf32, #tpu.memory_space<vmem>>) attributes {dimension_semantics = [#tpu.dimension_semantics<parallel>], iteration_bounds = array<i64: 1>, scalar_prefetch = 0 : i64, scratch_operands = 0 : i64, tpu.core_type = #tpu.core_type<tc>, window_params = [{transform_indices = @transform_0, window_bounds = array<i64: 8, 32>}, {pipeline_mode = #tpu.pipeline_mode<synchronous>, transform_indices = @transform_1, window_bounds = array<i64: 32, 128>}, {pipeline_mode = #tpu.pipeline_mode<synchronous>, transform_indices = @transform_2, window_bounds = array<i64: 1, 128>}, {pipeline_mode = #tpu.pipeline_mode<synchronous>, transform_indices = @transform_3, window_bounds = array<i64: 128, 128>}, {pipeline_mode = #tpu.pipeline_mode<synchronous>, transform_indices = @transform_4, window_bounds = array<i64: 1, 128>}, {pipeline_mode = #tpu.pipeline_mode<synchronous>, transform_indices = @transform_5, window_bounds = array<i64: 128, 256>}, {pipeline_mode = #tpu.pipeline_mode<synchronous>, transform_indices = @transform_6, window_bounds = array<i64: 1, 256>}, {pipeline_mode = #tpu.pipeline_mode<synchronous>, transform_indices = @transform_7, window_bounds = array<i64: 256, 128>}, {pipeline_mode = #tpu.pipeline_mode<synchronous>, transform_indices = @transform_8, window_bounds = array<i64: 1, 128>}, {pipeline_mode = #tpu.pipeline_mode<synchronous>, transform_indices = @transform_9, window_bounds = array<i64: 128, 128>}, {pipeline_mode = #tpu.pipeline_mode<synchronous>, transform_indices = @transform_10, window_bounds = array<i64: 1, 128>}, {pipeline_mode = #tpu.pipeline_mode<synchronous>, transform_indices = @transform_11, window_bounds = array<i64: 128, 128>}, {pipeline_mode = #tpu.pipeline_mode<synchronous>, transform_indices = @transform_12, window_bounds = array<i64: 1, 128>}, {transform_indices = @transform_13, window_bounds = array<i64: 8, 128>}]} {
    %c0 = arith.constant 0 : index
    %c0_0 = arith.constant 0 : index
    %0 = vector.load %arg2[%c0, %c0_0] : memref<32x128xbf16, #tpu.memory_space<vmem>>, vector<32x128xbf16>
    %c0_1 = arith.constant 0 : index
    %c0_2 = arith.constant 0 : index
    %1 = vector.load %arg4[%c0_1, %c0_2] : memref<128x128xbf16, #tpu.memory_space<vmem>>, vector<128x128xbf16>
    %c0_3 = arith.constant 0 : index
    %c0_4 = arith.constant 0 : index
    %2 = vector.load %arg6[%c0_3, %c0_4] : memref<128x256xbf16, #tpu.memory_space<vmem>>, vector<128x256xbf16>
    %c0_5 = arith.constant 0 : index
    %c0_6 = arith.constant 0 : index
    %3 = vector.load %arg8[%c0_5, %c0_6] : memref<256x128xbf16, #tpu.memory_space<vmem>>, vector<256x128xbf16>
    %c0_7 = arith.constant 0 : index
    %c0_8 = arith.constant 0 : index
    %4 = vector.load %arg10[%c0_7, %c0_8] : memref<128x128xbf16, #tpu.memory_space<vmem>>, vector<128x128xbf16>
    %c0_9 = arith.constant 0 : index
    %c0_10 = arith.constant 0 : index
    %5 = vector.load %arg12[%c0_9, %c0_10] : memref<128x128xbf16, #tpu.memory_space<vmem>>, vector<128x128xbf16>
    %c0_11 = arith.constant 0 : index
    %c0_12 = arith.constant 0 : index
    %6 = vector.load %arg3[%c0_11, %c0_12] : memref<1x128xbf16, #tpu.memory_space<vmem>>, vector<1x128xbf16>
    %c0_13 = arith.constant 0 : index
    %c0_14 = arith.constant 0 : index
    %7 = vector.load %arg5[%c0_13, %c0_14] : memref<1x128xbf16, #tpu.memory_space<vmem>>, vector<1x128xbf16>
    %c0_15 = arith.constant 0 : index
    %c0_16 = arith.constant 0 : index
    %8 = vector.load %arg7[%c0_15, %c0_16] : memref<1x256xbf16, #tpu.memory_space<vmem>>, vector<1x256xbf16>
    %c0_17 = arith.constant 0 : index
    %c0_18 = arith.constant 0 : index
    %9 = vector.load %arg9[%c0_17, %c0_18] : memref<1x128xbf16, #tpu.memory_space<vmem>>, vector<1x128xbf16>
    %c0_19 = arith.constant 0 : index
    %c0_20 = arith.constant 0 : index
    %10 = vector.load %arg11[%c0_19, %c0_20] : memref<1x128xbf16, #tpu.memory_space<vmem>>, vector<1x128xbf16>
    %c0_21 = arith.constant 0 : index
    %c0_22 = arith.constant 0 : index
    %11 = vector.load %arg13[%c0_21, %c0_22] : memref<1x128xf32, #tpu.memory_space<vmem>>, vector<1x128xf32>
    %c0_23 = arith.constant 0 : index
    %c0_24 = arith.constant 0 : index
    %12 = vector.load %arg1[%c0_23, %c0_24] : memref<8x32xf32, #tpu.memory_space<vmem>>, vector<8x32xf32>
    %13 = arith.truncf %12 : vector<8x32xf32> to vector<8x32xbf16>
    %cst = arith.constant dense<0.000000e+00> : vector<8x128xf32>
    %14 = tpu.matmul %13, %0, %cst {dimension_numbers = #tpu.dot_dimension_numbers<[1], [0], [0], [1], [0, 0, 1, 1], [], []>} : vector<8x32xbf16>, vector<32x128xbf16>, vector<8x128xf32> -> vector<8x128xf32>
    %15 = arith.truncf %14 : vector<8x128xf32> to vector<8x128xbf16>
    %16 = vector.broadcast %6 : vector<1x128xbf16> to vector<8x128xbf16>
    %17 = arith.addf %15, %16 : vector<8x128xbf16>
    %cst_25 = arith.constant 0.000000e+00 : bf16
    %18 = vector.broadcast %cst_25 : bf16 to vector<8x128xbf16>
    %19 = arith.maximumf %17, %18 : vector<8x128xbf16>
    %cst_26 = arith.constant dense<0.000000e+00> : vector<8x128xf32>
    %20 = tpu.matmul %19, %1, %cst_26 {dimension_numbers = #tpu.dot_dimension_numbers<[1], [0], [0], [1], [0, 0, 1, 1], [], []>} : vector<8x128xbf16>, vector<128x128xbf16>, vector<8x128xf32> -> vector<8x128xf32>
    %21 = arith.truncf %20 : vector<8x128xf32> to vector<8x128xbf16>
    %22 = vector.broadcast %7 : vector<1x128xbf16> to vector<8x128xbf16>
    %23 = arith.addf %21, %22 : vector<8x128xbf16>
    %cst_27 = arith.constant 0.000000e+00 : bf16
    %24 = vector.broadcast %cst_27 : bf16 to vector<8x128xbf16>
    %25 = arith.maximumf %23, %24 : vector<8x128xbf16>
    %cst_28 = arith.constant dense<0.000000e+00> : vector<8x256xf32>
    %26 = tpu.matmul %25, %2, %cst_28 {dimension_numbers = #tpu.dot_dimension_numbers<[1], [0], [0], [1], [0, 0, 1, 1], [], []>} : vector<8x128xbf16>, vector<128x256xbf16>, vector<8x256xf32> -> vector<8x256xf32>
    %27 = arith.truncf %26 : vector<8x256xf32> to vector<8x256xbf16>
    %28 = vector.broadcast %8 : vector<1x256xbf16> to vector<8x256xbf16>
    %29 = arith.addf %27, %28 : vector<8x256xbf16>
    %cst_29 = arith.constant 0.000000e+00 : bf16
    %30 = vector.broadcast %cst_29 : bf16 to vector<8x256xbf16>
    %31 = arith.maximumf %29, %30 : vector<8x256xbf16>
    %cst_30 = arith.constant dense<0.000000e+00> : vector<8x128xf32>
    %32 = tpu.matmul %31, %3, %cst_30 {dimension_numbers = #tpu.dot_dimension_numbers<[1], [0], [0], [1], [0, 0, 1, 1], [], []>} : vector<8x256xbf16>, vector<256x128xbf16>, vector<8x128xf32> -> vector<8x128xf32>
    %33 = arith.truncf %32 : vector<8x128xf32> to vector<8x128xbf16>
    %34 = vector.broadcast %9 : vector<1x128xbf16> to vector<8x128xbf16>
    %35 = arith.addf %33, %34 : vector<8x128xbf16>
    %cst_31 = arith.constant 0.000000e+00 : bf16
    %36 = vector.broadcast %cst_31 : bf16 to vector<8x128xbf16>
    %37 = arith.maximumf %35, %36 : vector<8x128xbf16>
    %cst_32 = arith.constant dense<0.000000e+00> : vector<8x128xf32>
    %38 = tpu.matmul %37, %4, %cst_32 {dimension_numbers = #tpu.dot_dimension_numbers<[1], [0], [0], [1], [0, 0, 1, 1], [], []>} : vector<8x128xbf16>, vector<128x128xbf16>, vector<8x128xf32> -> vector<8x128xf32>
    %39 = arith.truncf %38 : vector<8x128xf32> to vector<8x128xbf16>
    %40 = vector.broadcast %10 : vector<1x128xbf16> to vector<8x128xbf16>
    %41 = arith.addf %39, %40 : vector<8x128xbf16>
    %cst_33 = arith.constant 0.000000e+00 : bf16
    %42 = vector.broadcast %cst_33 : bf16 to vector<8x128xbf16>
    %43 = arith.maximumf %41, %42 : vector<8x128xbf16>
    %cst_34 = arith.constant dense<0.000000e+00> : vector<8x128xf32>
    %44 = tpu.matmul %43, %5, %cst_34 {dimension_numbers = #tpu.dot_dimension_numbers<[1], [0], [0], [1], [0, 0, 1, 1], [], []>} : vector<8x128xbf16>, vector<128x128xbf16>, vector<8x128xf32> -> vector<8x128xf32>
    %45 = vector.broadcast %11 : vector<1x128xf32> to vector<8x128xf32>
    %46 = arith.addf %44, %45 : vector<8x128xf32>
    %cst_35 = arith.constant dense<0xFF800000> : vector<8xf32>
    %47 = vector.multi_reduction <maximumf>, %46, %cst_35 [1] : vector<8x128xf32> to vector<8xf32>
    %48 = vector.shape_cast %47 : vector<8xf32> to vector<8x1xf32>
    %49 = vector.broadcast %48 : vector<8x1xf32> to vector<8x128xf32>
    %50 = arith.subf %46, %49 : vector<8x128xf32>
    %51 = math.exp %50 : vector<8x128xf32>
    %cst_36 = arith.constant dense<0.000000e+00> : vector<8xf32>
    %52 = vector.multi_reduction <add>, %51, %cst_36 [1] : vector<8x128xf32> to vector<8xf32>
    %53 = vector.shape_cast %52 : vector<8xf32> to vector<8x1xf32>
    %54 = tpu.reciprocal %53 {approx = true} : vector<8x1xf32> -> vector<8x1xf32>
    %55 = vector.broadcast %54 : vector<8x1xf32> to vector<8x128xf32>
    %56 = arith.mulf %51, %55 : vector<8x128xf32>
    %c0_37 = arith.constant 0 : index
    %c0_38 = arith.constant 0 : index
    %57 = vector.load %arg14[%c0_37, %c0_38] : memref<8x128xf32, #tpu.memory_space<vmem>>, vector<8x128xf32>
    tpu.vector_store %arg14[%c0_37, %c0_38], %56 {strides = array<i32>} : memref<8x128xf32, #tpu.memory_space<vmem>>, vector<8x128xf32>,
    return
  }
  func.func @transform_0(%arg0: i32) -> (i32, i32) {
    %c0_i32 = arith.constant 0 : i32
    %c0_i32_0 = arith.constant 0 : i32
    return %arg0, %c0_i32 : i32, i32
  }
  func.func @transform_1(%arg0: i32) -> (i32, i32) {
    %c0_i32 = arith.constant 0 : i32
    %c0_i32_0 = arith.constant 0 : i32
    %c0_i32_1 = arith.constant 0 : i32
    return %c0_i32, %c0_i32_0 : i32, i32
  }
  func.func @transform_2(%arg0: i32) -> (i32, i32) {
    %c0_i32 = arith.constant 0 : i32
    %c0_i32_0 = arith.constant 0 : i32
    %c0_i32_1 = arith.constant 0 : i32
    return %c0_i32, %c0_i32_0 : i32, i32
  }
  func.func @transform_3(%arg0: i32) -> (i32, i32) {
    %c0_i32 = arith.constant 0 : i32
    %c0_i32_0 = arith.constant 0 : i32
    %c0_i32_1 = arith.constant 0 : i32
    return %c0_i32, %c0_i32_0 : i32, i32
  }
  func.func @transform_4(%arg0: i32) -> (i32, i32) {
    %c0_i32 = arith.constant 0 : i32
    %c0_i32_0 = arith.constant 0 : i32
    %c0_i32_1 = arith.constant 0 : i32
    return %c0_i32, %c0_i32_0 : i32, i32
  }
  func.func @transform_5(%arg0: i32) -> (i32, i32) {
    %c0_i32 = arith.constant 0 : i32
    %c0_i32_0 = arith.constant 0 : i32
    %c0_i32_1 = arith.constant 0 : i32
    return %c0_i32, %c0_i32_0 : i32, i32
  }
  func.func @transform_6(%arg0: i32) -> (i32, i32) {
    %c0_i32 = arith.constant 0 : i32
    %c0_i32_0 = arith.constant 0 : i32
    %c0_i32_1 = arith.constant 0 : i32
    return %c0_i32, %c0_i32_0 : i32, i32
  }
  func.func @transform_7(%arg0: i32) -> (i32, i32) {
    %c0_i32 = arith.constant 0 : i32
    %c0_i32_0 = arith.constant 0 : i32
    %c0_i32_1 = arith.constant 0 : i32
    return %c0_i32, %c0_i32_0 : i32, i32
  }
  func.func @transform_8(%arg0: i32) -> (i32, i32) {
    %c0_i32 = arith.constant 0 : i32
    %c0_i32_0 = arith.constant 0 : i32
    %c0_i32_1 = arith.constant 0 : i32
    return %c0_i32, %c0_i32_0 : i32, i32
  }
  func.func @transform_9(%arg0: i32) -> (i32, i32) {
    %c0_i32 = arith.constant 0 : i32
    %c0_i32_0 = arith.constant 0 : i32
    %c0_i32_1 = arith.constant 0 : i32
    return %c0_i32, %c0_i32_0 : i32, i32
  }
  func.func @transform_10(%arg0: i32) -> (i32, i32) {
    %c0_i32 = arith.constant 0 : i32
    %c0_i32_0 = arith.constant 0 : i32
    %c0_i32_1 = arith.constant 0 : i32
    return %c0_i32, %c0_i32_0 : i32, i32
  }
  func.func @transform_11(%arg0: i32) -> (i32, i32) {
    %c0_i32 = arith.constant 0 : i32
    %c0_i32_0 = arith.constant 0 : i32
    %c0_i32_1 = arith.constant 0 : i32
    return %c0_i32, %c0_i32_0 : i32, i32
  }
  func.func @transform_12(%arg0: i32) -> (i32, i32) {
    %c0_i32 = arith.constant 0 : i32
    %c0_i32_0 = arith.constant 0 : i32
    %c0_i32_1 = arith.constant 0 : i32
    return %c0_i32, %c0_i32_0 : i32, i32
  }
  func.func @transform_13(%arg0: i32) -> (i32, i32) {
    %c0_i32 = arith.constant 0 : i32
    %c0_i32_0 = arith.constant 0 : i32
    return %arg0, %c0_i32 : i32, i32
  }
}

</mosaic_0001>

<llo_original>
// kernel: tpu_custom_call.1
$region0: #{tpu_custom_call.1}
  #allocation0 [shape = 'u32[]', space=smem, size = 0x4, offset = 0x4, fixed_abs, tag = 'smem constant byte address 0x4 - core index']
  #allocation1 [shape = 'u32[144,128]{1,0:T(1,128)}', space=vmem, size = 0x12000, scoped, tag = 'internal scratch']
  %s0 = inlined_call_operand.hbm [shape: f32[8,32], index: 0, kind: input, shape index: {}]
  %s1 = inlined_call_operand.hbm [shape: bf16[32,128], index: 1, kind: input, shape index: {}]
  %s2 = inlined_call_operand.vmem [shape: bf16[1,128], index: 2, kind: input, shape index: {}]
  %s3 = inlined_call_operand.hbm [shape: bf16[128,128], index: 3, kind: input, shape index: {}]
  %s4 = inlined_call_operand.vmem [shape: bf16[1,128], index: 4, kind: input, shape index: {}]
  %s5 = inlined_call_operand.hbm [shape: bf16[128,256], index: 5, kind: input, shape index: {}]
  %s6 = inlined_call_operand.vmem [shape: bf16[1,256], index: 6, kind: input, shape index: {}]
  %s7 = inlined_call_operand.hbm [shape: bf16[256,128], index: 7, kind: input, shape index: {}]
  %s8 = inlined_call_operand.vmem [shape: bf16[1,128], index: 8, kind: input, shape index: {}]
  %s9 = inlined_call_operand.hbm [shape: bf16[128,128], index: 9, kind: input, shape index: {}]
  %s10 = inlined_call_operand.vmem [shape: bf16[1,128], index: 10, kind: input, shape index: {}]
  %s11 = inlined_call_operand.hbm [shape: bf16[128,128], index: 11, kind: input, shape index: {}]
  %s12 = inlined_call_operand.vmem [shape: f32[1,128], index: 12, kind: input, shape index: {}]
  %s13 = inlined_call_operand.hbm [shape: f32[8,128], index: 13, kind: output, shape index: {}]
  %s14 = sld [smem:[#allocation0]]
  $region90: #{tpu_custom_call.1} parent=0
    _
  %s16 = ssub.s32 1, %s14
  %s17 = scalar_select 0, %s16, %s14
  $region1: #{tpu_custom_call.1} parent=0
    #allocation2 [shape = 'u8[4096]{0}', space=vmem, size = 0x1000, scoped, tag = 'input window, operand 0, single buffered']
    #allocation3 [shape = 's32[1]{0}', space=sflag, size = 0x4, scoped, tag = 'scoped memory for tpu_custom_call.1']
    #allocation4 [shape = 's32[1]{0}', space=sflag, size = 0x4, scoped, tag = 'scoped memory for tpu_custom_call.1']
    #allocation5 [shape = 'u8[8192]{0}', space=vmem, size = 0x2000, scoped, tag = 'input window, operand 1, single buffered']
    #allocation6 [shape = 's32[1]{0}', space=sflag, size = 0x4, scoped, tag = 'scoped memory for tpu_custom_call.1']
    #allocation7 [shape = 'u8[32768]{0}', space=vmem, size = 0x8000, scoped, tag = 'input window, operand 3, single buffered']
    #allocation8 [shape = 'u8[65536]{0}', space=vmem, size = 0x10000, scoped, tag = 'input window, operand 5, single buffered']
    #allocation9 [shape = 's32[1]{0}', space=sflag, size = 0x4, scoped, tag = 'scoped memory for tpu_custom_call.1']
    #allocation10 [shape = 'u8[65536]{0}', space=vmem, size = 0x10000, scoped, tag = 'input window, operand 7, single buffered']
    #allocation11 [shape = 'u8[32768]{0}', space=vmem, size = 0x8000, scoped, tag = 'input window, operand 9, single buffered']
    #allocation12 [shape = 's32[1]{0}', space=sflag, size = 0x4, scoped, tag = 'scoped memory for tpu_custom_call.1']
    #allocation13 [shape = 'u8[32768]{0}', space=vmem, size = 0x8000, scoped, tag = 'input window, operand 11, single buffered']
    #allocation14 [shape = 'u8[4096]{0}', space=vmem, size = 0x1000, scoped, tag = 'output window, operand 0, single buffered']
    %18 = vsyncpa [#allocation3], 0
    %19 = vsyncpa [#allocation6], 0
    %20 = vsyncpa [#allocation9], 0
    %21 = vsyncpa [#allocation12], 0
    %22 = vsyncpa [#allocation4], 0
    // Predicated region
    $region2: #{tpu_custom_call.1} parent=1 // pred_check
      _
    $region3: #{tpu_custom_call.1} parent=1 // pred_check_branch
      %24 = sbr.rel (0) target = $region5
    $region4: #{tpu_custom_call.1} parent=1 // pred_region
      %s26 = ssub.s32 128, 128
      %27 = vsyncadd [#allocation3], %s26
      %s29 = sshll.u32 [#allocation2], 4
      %s30 = int_to_ptr.vmem [resolvable:$true] %s29
      %32 = dma.hbm_to_vmem [thread:$0]  %s0, 128, %s30, [#allocation3]
    $region5: #{tpu_custom_call.1} parent=1 // pred_fallthru
      _
    // Predicated region
    $region6: #{tpu_custom_call.1} parent=1 // pred_check
      _
    $region7: #{tpu_custom_call.1} parent=1 // pred_check_branch
      %34 = sbr.rel (0) target = $region9
    $region8: #{tpu_custom_call.1} parent=1 // pred_region
      %s36 = ssub.s32 256, 256
      %37 = vsyncadd [#allocation6], %s36
      %s38 = sshll.u32 [#allocation5], 4
      %s39 = int_to_ptr.vmem [resolvable:$true] %s38
      %44 = dma.hbm_to_vmem [thread:$0]  %s1, 256, %s39, [#allocation6], 64, 64, 4
    $region9: #{tpu_custom_call.1} parent=1 // pred_fallthru
      _
    // Predicated region
    $region10: #{tpu_custom_call.1} parent=1 // pred_check
      _
    $region11: #{tpu_custom_call.1} parent=1 // pred_check_branch
      %46 = sbr.rel (0) target = $region13
    $region12: #{tpu_custom_call.1} parent=1 // pred_region
      _
    $region13: #{tpu_custom_call.1} parent=1 // pred_fallthru
      _
    // Predicated region
    $region14: #{tpu_custom_call.1} parent=1 // pred_check
      _
    $region15: #{tpu_custom_call.1} parent=1 // pred_check_branch
      %48 = sbr.rel (0) target = $region17
    $region16: #{tpu_custom_call.1} parent=1 // pred_region
      %s50 = ssub.s32 1024, 1024
      %51 = vsyncadd [#allocation6], %s50
      %s52 = sshll.u32 [#allocation7], 4
      %s53 = int_to_ptr.vmem [resolvable:$true] %s52
      %58 = dma.hbm_to_vmem [thread:$0]  %s3, 1024, %s53, [#allocation6], 64, 64, 4
    $region17: #{tpu_custom_call.1} parent=1 // pred_fallthru
      _
    // Predicated region
    $region18: #{tpu_custom_call.1} parent=1 // pred_check
      _
    $region19: #{tpu_custom_call.1} parent=1 // pred_check_branch
      %60 = sbr.rel (0) target = $region21
    $region20: #{tpu_custom_call.1} parent=1 // pred_region
      _
    $region21: #{tpu_custom_call.1} parent=1 // pred_fallthru
      _
    // Predicated region
    $region22: #{tpu_custom_call.1} parent=1 // pred_check
      _
    $region23: #{tpu_custom_call.1} parent=1 // pred_check_branch
      %62 = sbr.rel (0) target = $region25
    $region24: #{tpu_custom_call.1} parent=1 // pred_region
      %s64 = ssub.s32 2048, 2048
      %65 = vsyncadd [#allocation9], %s64
      %s66 = sshll.u32 [#allocation8], 4
      %s67 = int_to_ptr.vmem [resolvable:$true] %s66
      %72 = dma.hbm_to_vmem [thread:$0]  %s5, 2048, %s67, [#allocation9], 128, 128, 8
    $region25: #{tpu_custom_call.1} parent=1 // pred_fallthru
      _
    // Predicated region
    $region26: #{tpu_custom_call.1} parent=1 // pred_check
      _
    $region27: #{tpu_custom_call.1} parent=1 // pred_check_branch
      %74 = sbr.rel (0) target = $region29
    $region28: #{tpu_custom_call.1} parent=1 // pred_region
      _
    $region29: #{tpu_custom_call.1} parent=1 // pred_fallthru
      _
    // Predicated region
    $region30: #{tpu_custom_call.1} parent=1 // pred_check
      _
    $region31: #{tpu_custom_call.1} parent=1 // pred_check_branch
      %76 = sbr.rel (0) target = $region33
    $region32: #{tpu_custom_call.1} parent=1 // pred_region
      %s78 = ssub.s32 2048, 2048
      %79 = vsyncadd [#allocation9], %s78
      %s80 = sshll.u32 [#allocation10], 4
      %s81 = int_to_ptr.vmem [resolvable:$true] %s80
      %86 = dma.hbm_to_vmem [thread:$0]  %s7, 2048, %s81, [#allocation9], 64, 64, 4
    $region33: #{tpu_custom_call.1} parent=1 // pred_fallthru
      _
    // Predicated region
    $region34: #{tpu_custom_call.1} parent=1 // pred_check
      _
    $region35: #{tpu_custom_call.1} parent=1 // pred_check_branch
      %88 = sbr.rel (0) target = $region37
    $region36: #{tpu_custom_call.1} parent=1 // pred_region
      _
    $region37: #{tpu_custom_call.1} parent=1 // pred_fallthru
      _
    // Predicated region
    $region38: #{tpu_custom_call.1} parent=1 // pred_check
      _
    $region39: #{tpu_custom_call.1} parent=1 // pred_check_branch
      %90 = sbr.rel (0) target = $region41
    $region40: #{tpu_custom_call.1} parent=1 // pred_region
      %s92 = ssub.s32 1024, 1024
      %93 = vsyncadd [#allocation12], %s92
      %s94 = sshll.u32 [#allocation11], 4
      %s95 = int_to_ptr.vmem [resolvable:$true] %s94
      %100 = dma.hbm_to_vmem [thread:$0]  %s9, 1024, %s95, [#allocation12], 64, 64, 4
    $region41: #{tpu_custom_call.1} parent=1 // pred_fallthru
      _
    // Predicated region
    $region42: #{tpu_custom_call.1} parent=1 // pred_check
      _
    $region43: #{tpu_custom_call.1} parent=1 // pred_check_branch
      %102 = sbr.rel (0) target = $region45
    $region44: #{tpu_custom_call.1} parent=1 // pred_region
      _
    $region45: #{tpu_custom_call.1} parent=1 // pred_fallthru
      _
    // Predicated region
    $region46: #{tpu_custom_call.1} parent=1 // pred_check
      _
    $region47: #{tpu_custom_call.1} parent=1 // pred_check_branch
      %104 = sbr.rel (0) target = $region49
    $region48: #{tpu_custom_call.1} parent=1 // pred_region
      %s106 = ssub.s32 1024, 1024
      %107 = vsyncadd [#allocation12], %s106
      %s108 = sshll.u32 [#allocation13], 4
      %s109 = int_to_ptr.vmem [resolvable:$true] %s108
      %114 = dma.hbm_to_vmem [thread:$0]  %s11, 1024, %s109, [#allocation12], 64, 64, 4
    $region49: #{tpu_custom_call.1} parent=1 // pred_fallthru
      _
    // Predicated region
    $region50: #{tpu_custom_call.1} parent=1 // pred_check
      _
    $region51: #{tpu_custom_call.1} parent=1 // pred_check_branch
      %116 = sbr.rel (0) target = $region53
    $region52: #{tpu_custom_call.1} parent=1 // pred_region
      _
    $region53: #{tpu_custom_call.1} parent=1 // pred_fallthru
      _
    // Predicated region
    $region54: #{tpu_custom_call.1} parent=1 // pred_check
      _
    $region55: #{tpu_custom_call.1} parent=1 // pred_check_branch
      %118 = sbr.rel (0) target = $region57
    $region56: #{tpu_custom_call.1} parent=1 // pred_region
      %119 = dma.done [#allocation3], 128
    $region57: #{tpu_custom_call.1} parent=1 // pred_fallthru
      _
    // Predicated region
    $region58: #{tpu_custom_call.1} parent=1 // pred_check
      _
    $region59: #{tpu_custom_call.1} parent=1 // pred_check_branch
      %121 = sbr.rel (0) target = $region61
    $region60: #{tpu_custom_call.1} parent=1 // pred_region
      %122 = dma.done [#allocation6], 256
    $region61: #{tpu_custom_call.1} parent=1 // pred_fallthru
      _
    // Predicated region
    $region62: #{tpu_custom_call.1} parent=1 // pred_check
      _
    $region63: #{tpu_custom_call.1} parent=1 // pred_check_branch
      %124 = sbr.rel (0) target = $region65
    $region64: #{tpu_custom_call.1} parent=1 // pred_region
      %125 = dma.done [#allocation6], 1024
    $region65: #{tpu_custom_call.1} parent=1 // pred_fallthru
      _
    // Predicated region
    $region66: #{tpu_custom_call.1} parent=1 // pred_check
      _
    $region67: #{tpu_custom_call.1} parent=1 // pred_check_branch
      %127 = sbr.rel (0) target = $region69
    $region68: #{tpu_custom_call.1} parent=1 // pred_region
      %128 = dma.done [#allocation9], 2048
    $region69: #{tpu_custom_call.1} parent=1 // pred_fallthru
      _
    // Predicated region
    $region70: #{tpu_custom_call.1} parent=1 // pred_check
      _
    $region71: #{tpu_custom_call.1} parent=1 // pred_check_branch
      %130 = sbr.rel (0) target = $region73
    $region72: #{tpu_custom_call.1} parent=1 // pred_region
      %131 = dma.done [#allocation9], 2048
    $region73: #{tpu_custom_call.1} parent=1 // pred_fallthru
      _
    // Predicated region
    $region74: #{tpu_custom_call.1} parent=1 // pred_check
      _
    $region75: #{tpu_custom_call.1} parent=1 // pred_check_branch
      %133 = sbr.rel (0) target = $region77
    $region76: #{tpu_custom_call.1} parent=1 // pred_region
      %134 = dma.done [#allocation12], 1024
    $region77: #{tpu_custom_call.1} parent=1 // pred_fallthru
      _
    // Predicated region
    $region78: #{tpu_custom_call.1} parent=1 // pred_check
      _
    $region79: #{tpu_custom_call.1} parent=1 // pred_check_branch
      %136 = sbr.rel (0) target = $region81
    $region80: #{tpu_custom_call.1} parent=1 // pred_region
      %137 = dma.done [#allocation12], 1024
    $region81: #{tpu_custom_call.1} parent=1 // pred_fallthru
      _
    %v139 = vld [vmem:[#allocation5] sm:$0xf]
    %v140 = vld [vmem:[#allocation5 + $0x4] sm:$0xf]
    %v141 = vld [vmem:[#allocation5 + $0x8] sm:$0xf]
    %v142 = vld [vmem:[#allocation5 + $0xc] sm:$0xf]
    %v143 = vld [vmem:[#allocation7] sm:$0xf]
    %v144 = vld [vmem:[#allocation7 + $0x4] sm:$0xf]
    %v145 = vld [vmem:[#allocation7 + $0x8] sm:$0xf]
    %v146 = vld [vmem:[#allocation7 + $0xc] sm:$0xf]
    %v147 = vld [vmem:[#allocation7 + $0x10] sm:$0xf]
    %v148 = vld [vmem:[#allocation7 + $0x14] sm:$0xf]
    %v149 = vld [vmem:[#allocation7 + $0x18] sm:$0xf]
    %v150 = vld [vmem:[#allocation7 + $0x1c] sm:$0xf]
    %v151 = vld [vmem:[#allocation7 + $0x20] sm:$0xf]
    %v152 = vld [vmem:[#allocation7 + $0x24] sm:$0xf]
    %v153 = vld [vmem:[#allocation7 + $0x28] sm:$0xf]
    %v154 = vld [vmem:[#allocation7 + $0x2c] sm:$0xf]
    %v155 = vld [vmem:[#allocation7 + $0x30] sm:$0xf]
    %v156 = vld [vmem:[#allocation7 + $0x34] sm:$0xf]
    %v157 = vld [vmem:[#allocation7 + $0x38] sm:$0xf]
    %v158 = vld [vmem:[#allocation7 + $0x3c] sm:$0xf]
    %v159 = vld [vmem:[#allocation8] sm:$0xff]
    %v160 = vld [vmem:[#allocation8 + $0x8] sm:$0xff]
    %v161 = vld [vmem:[#allocation8 + $0x10] sm:$0xff]
    %v162 = vld [vmem:[#allocation8 + $0x18] sm:$0xff]
    %v163 = vld [vmem:[#allocation8 + $0x20] sm:$0xff]
    %v164 = vld [vmem:[#allocation8 + $0x28] sm:$0xff]
    %v165 = vld [vmem:[#allocation8 + $0x30] sm:$0xff]
    %v166 = vld [vmem:[#allocation8 + $0x38] sm:$0xff]
    %v167 = vld [vmem:[#allocation8 + $0x40] sm:$0xff]
    %v168 = vld [vmem:[#allocation8 + $0x48] sm:$0xff]
    %v169 = vld [vmem:[#allocation8 + $0x50] sm:$0xff]
    %v170 = vld [vmem:[#allocation8 + $0x58] sm:$0xff]
    %v171 = vld [vmem:[#allocation8 + $0x60] sm:$0xff]
    %v172 = vld [vmem:[#allocation8 + $0x68] sm:$0xff]
    %v173 = vld [vmem:[#allocation8 + $0x70] sm:$0xff]
    %v174 = vld [vmem:[#allocation8 + $0x78] sm:$0xff]
    %v175 = vld [vmem:[#allocation10] sm:$0xf]
    %v176 = vld [vmem:[#allocation10 + $0x4] sm:$0xf]
    %v177 = vld [vmem:[#allocation10 + $0x8] sm:$0xf]
    %v178 = vld [vmem:[#allocation10 + $0xc] sm:$0xf]
    %v179 = vld [vmem:[#allocation10 + $0x10] sm:$0xf]
    %v180 = vld [vmem:[#allocation10 + $0x14] sm:$0xf]
    %v181 = vld [vmem:[#allocation10 + $0x18] sm:$0xf]
    %v182 = vld [vmem:[#allocation10 + $0x1c] sm:$0xf]
    %v183 = vld [vmem:[#allocation10 + $0x20] sm:$0xf]
    %v184 = vld [vmem:[#allocation10 + $0x24] sm:$0xf]
    %v185 = vld [vmem:[#allocation10 + $0x28] sm:$0xf]
    %v186 = vld [vmem:[#allocation10 + $0x2c] sm:$0xf]
    %v187 = vld [vmem:[#allocation10 + $0x30] sm:$0xf]
    %v188 = vld [vmem:[#allocation10 + $0x34] sm:$0xf]
    %v189 = vld [vmem:[#allocation10 + $0x38] sm:$0xf]
    %v190 = vld [vmem:[#allocation10 + $0x3c] sm:$0xf]
    %v191 = vld [vmem:[#allocation10 + $0x40] sm:$0xf]
    %v192 = vld [vmem:[#allocation10 + $0x44] sm:$0xf]
    %v193 = vld [vmem:[#allocation10 + $0x48] sm:$0xf]
    %v194 = vld [vmem:[#allocation10 + $0x4c] sm:$0xf]
    %v195 = vld [vmem:[#allocation10 + $0x50] sm:$0xf]
    %v196 = vld [vmem:[#allocation10 + $0x54] sm:$0xf]
    %v197 = vld [vmem:[#allocation10 + $0x58] sm:$0xf]
    %v198 = vld [vmem:[#allocation10 + $0x5c] sm:$0xf]
    %v199 = vld [vmem:[#allocation10 + $0x60] sm:$0xf]
    %v200 = vld [vmem:[#allocation10 + $0x64] sm:$0xf]
    %v201 = vld [vmem:[#allocation10 + $0x68] sm:$0xf]
    %v202 = vld [vmem:[#allocation10 + $0x6c] sm:$0xf]
    %v203 = vld [vmem:[#allocation10 + $0x70] sm:$0xf]
    %v204 = vld [vmem:[#allocation10 + $0x74] sm:$0xf]
    %v205 = vld [vmem:[#allocation10 + $0x78] sm:$0xf]
    %v206 = vld [vmem:[#allocation10 + $0x7c] sm:$0xf]
    %v207 = vld [vmem:[#allocation11] sm:$0xf]
    %v208 = vld [vmem:[#allocation11 + $0x4] sm:$0xf]
    %v209 = vld [vmem:[#allocation11 + $0x8] sm:$0xf]
    %v210 = vld [vmem:[#allocation11 + $0xc] sm:$0xf]
    %v211 = vld [vmem:[#allocation11 + $0x10] sm:$0xf]
    %v212 = vld [vmem:[#allocation11 + $0x14] sm:$0xf]
    %v213 = vld [vmem:[#allocation11 + $0x18] sm:$0xf]
    %v214 = vld [vmem:[#allocation11 + $0x1c] sm:$0xf]
    %v215 = vld [vmem:[#allocation11 + $0x20] sm:$0xf]
    %v216 = vld [vmem:[#allocation11 + $0x24] sm:$0xf]
    %v217 = vld [vmem:[#allocation11 + $0x28] sm:$0xf]
    %v218 = vld [vmem:[#allocation11 + $0x2c] sm:$0xf]
    %v219 = vld [vmem:[#allocation11 + $0x30] sm:$0xf]
    %v220 = vld [vmem:[#allocation11 + $0x34] sm:$0xf]
    %v221 = vld [vmem:[#allocation11 + $0x38] sm:$0xf]
    %v222 = vld [vmem:[#allocation11 + $0x3c] sm:$0xf]
    %v223 = vld [vmem:[#allocation13] sm:$0xf]
    %v224 = vld [vmem:[#allocation13 + $0x4] sm:$0xf]
    %v225 = vld [vmem:[#allocation13 + $0x8] sm:$0xf]
    %v226 = vld [vmem:[#allocation13 + $0xc] sm:$0xf]
    %v227 = vld [vmem:[#allocation13 + $0x10] sm:$0xf]
    %v228 = vld [vmem:[#allocation13 + $0x14] sm:$0xf]
    %v229 = vld [vmem:[#allocation13 + $0x18] sm:$0xf]
    %v230 = vld [vmem:[#allocation13 + $0x1c] sm:$0xf]
    %v231 = vld [vmem:[#allocation13 + $0x20] sm:$0xf]
    %v232 = vld [vmem:[#allocation13 + $0x24] sm:$0xf]
    %v233 = vld [vmem:[#allocation13 + $0x28] sm:$0xf]
    %v234 = vld [vmem:[#allocation13 + $0x2c] sm:$0xf]
    %v235 = vld [vmem:[#allocation13 + $0x30] sm:$0xf]
    %v236 = vld [vmem:[#allocation13 + $0x34] sm:$0xf]
    %v237 = vld [vmem:[#allocation13 + $0x38] sm:$0xf]
    %v238 = vld [vmem:[#allocation13 + $0x3c] sm:$0xf]
    %v239 = vld [vmem:[%s2] sm:$0x1]
    %v240 = vld [vmem:[%s4] sm:$0x1]
    %v241 = vld [vmem:[%s6] sm:$0x3]
    %v242 = vld [vmem:[%s8] sm:$0x1]
    %v243 = vld [vmem:[%s10] sm:$0x1]
    %v244 = vld [vmem:[%s12] sm:$0x1]
    %v245 = vld [vmem:[#allocation2] sm:$0xff]
    %v246 = vpack.c.bf16 %v245, %v245
    %v251 = vunpack.c.l.b16 %v139
    %v252 = vunpack.c.l.b16 %v140
    %v253 = vunpack.c.l.b16 %v141
    %v254 = vunpack.c.l.b16 %v142
    %v255 = vpack.c.b16 %v252, %v251
    %v256 = vpack.c.b16 %v254, %v253
    %vm259 = vcmask 261120
    %v261 = vsel %vm259, %v246, 0
    %263 = vmatprep.subr.bf16.mxu0 0
    %264 = vmatpush1.bf16.msra.mxu0 0
    %265 = vmatprep.subr.bf16.mxu0 0
    %266 = vmatpush1.bf16.msra.mxu0 0
    %267 = vmatprep.subr.bf16.mxu0 0
    %268 = vmatpush1.bf16.msra.mxu0 0
    %269 = vmatprep.subr.bf16.mxu0 0
    %270 = vmatpush1.bf16.msra.mxu0 0
    %271 = vmatprep.subr.bf16.mxu0 0
    %272 = vmatpush1.bf16.msra.mxu0 0
    %273 = vmatprep.subr.bf16.mxu0 0
    %274 = vmatpush1.bf16.msra.mxu0 0
    %275 = vmatprep.subr.bf16.mxu0 0
    %276 = vmatpush1.bf16.msra.mxu0 %v256
    %277 = vmatprep.subr.bf16.mxu0 0
    %278 = vmatpush1.bf16.msra.mxu0 %v255
    %279 = vmatprep.subr.bf16.mxu0 0
    %280 = vmatpush2.bf16.msra.mxu0 0
    %281 = vmatprep.subr.bf16.mxu0 0
    %282 = vmatpush2.bf16.msra.mxu0 0
    %283 = vmatprep.subr.bf16.mxu0 0
    %284 = vmatpush2.bf16.msra.mxu0 0
    %285 = vmatprep.subr.bf16.mxu0 0
    %286 = vmatpush2.bf16.msra.mxu0 0
    %287 = vmatprep.subr.bf16.mxu0 0
    %288 = vmatpush2.bf16.msra.mxu0 0
    %289 = vmatprep.subr.bf16.mxu0 0
    %290 = vmatpush2.bf16.msra.mxu0 0
    %291 = vmatprep.subr.bf16.mxu0 0
    %292 = vmatpush2.bf16.msra.mxu0 0
    %293 = vmatprep.subr.bf16.mxu0 0
    %294 = vmatpush2.bf16.msra.mxu0 0
    %295 = vmatprep.mubr.bf16.mxu0 0
    %296 = vmatmul.mubr.bf16.gmra.mxu0 %v261
    %v297 = vpop.f32.mrf.mxu0
    %v298 = vadd.f32 0.0, %v297
    %v299 = vpop.f32.mrf.mxu0
    %v300 = vpop.f32.mrf.mxu0
    %v301 = vpop.f32.mrf.mxu0
    %302 = vdwg.mxu0
    %v303 = vpack.c.bf16 %v298, %v298
    %v305 = vpack.i.b16 %v239, %v239
    %v307 = vlaneseq
    %v308 = vshrl.u32 %v307, 7
    %v309 = vsub.s32 0, %v308
    %v310 = vrot.slane %v305, %v309
    %v311 = vadd.bf16 %v303, %v310
    %v312 = vmax.bf16 %v311, 0
    %v329 = vunpack.c.l.b16 %v143
    %v330 = vunpack.c.l.b16 %v144
    %v331 = vunpack.c.l.b16 %v145
    %v332 = vunpack.c.l.b16 %v146
    %v333 = vunpack.c.l.b16 %v147
    %v334 = vunpack.c.l.b16 %v148
    %v335 = vunpack.c.l.b16 %v149
    %v336 = vunpack.c.l.b16 %v150
    %v337 = vunpack.c.l.b16 %v151
    %v338 = vunpack.c.l.b16 %v152
    %v339 = vunpack.c.l.b16 %v153
    %v340 = vunpack.c.l.b16 %v154
    %v341 = vunpack.c.l.b16 %v155
    %v342 = vunpack.c.l.b16 %v156
    %v343 = vunpack.c.l.b16 %v157
    %v344 = vunpack.c.l.b16 %v158
    %v345 = vpack.c.b16 %v330, %v329
    %v346 = vpack.c.b16 %v332, %v331
    %v347 = vpack.c.b16 %v334, %v333
    %v348 = vpack.c.b16 %v336, %v335
    %v349 = vpack.c.b16 %v338, %v337
    %v350 = vpack.c.b16 %v340, %v339
    %v351 = vpack.c.b16 %v342, %v341
    %v352 = vpack.c.b16 %v344, %v343
    %361 = vmatprep.subr.bf16.mxu0 0
    %362 = vmatpush1.bf16.msra.mxu0 %v352
    %363 = vmatprep.subr.bf16.mxu0 0
    %364 = vmatpush1.bf16.msra.mxu0 %v351
    %365 = vmatprep.subr.bf16.mxu0 0
    %366 = vmatpush1.bf16.msra.mxu0 %v350
    %367 = vmatprep.subr.bf16.mxu0 0
    %368 = vmatpush1.bf16.msra.mxu0 %v349
    %369 = vmatprep.subr.bf16.mxu0 0
    %370 = vmatpush1.bf16.msra.mxu0 %v348
    %371 = vmatprep.subr.bf16.mxu0 0
    %372 = vmatpush1.bf16.msra.mxu0 %v347
    %373 = vmatprep.subr.bf16.mxu0 0
    %374 = vmatpush1.bf16.msra.mxu0 %v346
    %375 = vmatprep.subr.bf16.mxu0 0
    %376 = vmatpush1.bf16.msra.mxu0 %v345
    %377 = vmatprep.subr.bf16.mxu0 0
    %378 = vmatpush2.bf16.msra.mxu0 0
    %379 = vmatprep.subr.bf16.mxu0 0
    %380 = vmatpush2.bf16.msra.mxu0 0
    %381 = vmatprep.subr.bf16.mxu0 0
    %382 = vmatpush2.bf16.msra.mxu0 0
    %383 = vmatprep.subr.bf16.mxu0 0
    %384 = vmatpush2.bf16.msra.mxu0 0
    %385 = vmatprep.subr.bf16.mxu0 0
    %386 = vmatpush2.bf16.msra.mxu0 0
    %387 = vmatprep.subr.bf16.mxu0 0
    %388 = vmatpush2.bf16.msra.mxu0 0
    %389 = vmatprep.subr.bf16.mxu0 0
    %390 = vmatpush2.bf16.msra.mxu0 0
    %391 = vmatprep.subr.bf16.mxu0 0
    %392 = vmatpush2.bf16.msra.mxu0 0
    %393 = vmatprep.mubr.bf16.mxu0 0
    %394 = vmatmul.mubr.bf16.gmra.mxu0 %v312
    %v395 = vpop.f32.mrf.mxu0
    %v396 = vadd.f32 0.0, %v395
    %v397 = vpop.f32.mrf.mxu0
    %v398 = vpop.f32.mrf.mxu0
    %v399 = vpop.f32.mrf.mxu0
    %400 = vdwg.mxu0
    %v401 = vpack.c.bf16 %v396, %v396
    %v403 = vpack.i.b16 %v240, %v240
    %v405 = vlaneseq
    %v406 = vshrl.u32 %v405, 7
    %v407 = vsub.s32 0, %v406
    %v408 = vrot.slane %v403, %v407
    %v409 = vadd.bf16 %v401, %v408
    %v410 = vmax.bf16 %v409, 0
    %v427 = vunpack.c.l.b16 %v159
    %v428 = vunpack.c.h.b16 %v159
    %v429 = vunpack.c.l.b16 %v160
    %v430 = vunpack.c.h.b16 %v160
    %v431 = vunpack.c.l.b16 %v161
    %v432 = vunpack.c.h.b16 %v161
    %v433 = vunpack.c.l.b16 %v162
    %v434 = vunpack.c.h.b16 %v162
    %v435 = vunpack.c.l.b16 %v163
    %v436 = vunpack.c.h.b16 %v163
    %v437 = vunpack.c.l.b16 %v164
    %v438 = vunpack.c.h.b16 %v164
    %v439 = vunpack.c.l.b16 %v165
    %v440 = vunpack.c.h.b16 %v165
    %v441 = vunpack.c.l.b16 %v166
    %v442 = vunpack.c.h.b16 %v166
    %v443 = vunpack.c.l.b16 %v167
    %v444 = vunpack.c.h.b16 %v167
    %v445 = vunpack.c.l.b16 %v168
    %v446 = vunpack.c.h.b16 %v168
    %v447 = vunpack.c.l.b16 %v169
    %v448 = vunpack.c.h.b16 %v169
    %v449 = vunpack.c.l.b16 %v170
    %v450 = vunpack.c.h.b16 %v170
    %v451 = vunpack.c.l.b16 %v171
    %v452 = vunpack.c.h.b16 %v171
    %v453 = vunpack.c.l.b16 %v172
    %v454 = vunpack.c.h.b16 %v172
    %v455 = vunpack.c.l.b16 %v173
    %v456 = vunpack.c.h.b16 %v173
    %v457 = vunpack.c.l.b16 %v174
    %v458 = vunpack.c.h.b16 %v174
    %v459 = vpack.c.b16 %v429, %v427
    %v460 = vpack.c.b16 %v430, %v428
    %v461 = vpack.c.b16 %v433, %v431
    %v462 = vpack.c.b16 %v434, %v432
    %v463 = vpack.c.b16 %v437, %v435
    %v464 = vpack.c.b16 %v438, %v436
    %v465 = vpack.c.b16 %v441, %v439
    %v466 = vpack.c.b16 %v442, %v440
    %v467 = vpack.c.b16 %v445, %v443
    %v468 = vpack.c.b16 %v446, %v444
    %v469 = vpack.c.b16 %v449, %v447
    %v470 = vpack.c.b16 %v450, %v448
    %v471 = vpack.c.b16 %v453, %v451
    %v472 = vpack.c.b16 %v454, %v452
    %v473 = vpack.c.b16 %v457, %v455
    %v474 = vpack.c.b16 %v458, %v456
    %491 = vmatprep.subr.bf16.mxu0 %v474
    %492 = vmatpush1.bf16.msra.mxu0 %v473
    %493 = vmatprep.subr.bf16.mxu0 %v472
    %494 = vmatpush1.bf16.msra.mxu0 %v471
    %495 = vmatprep.subr.bf16.mxu0 %v470
    %496 = vmatpush1.bf16.msra.mxu0 %v469
    %497 = vmatprep.subr.bf16.mxu0 %v468
    %498 = vmatpush1.bf16.msra.mxu0 %v467
    %499 = vmatprep.subr.bf16.mxu0 %v466
    %500 = vmatpush1.bf16.msra.mxu0 %v465
    %501 = vmatprep.subr.bf16.mxu0 %v464
    %502 = vmatpush1.bf16.msra.mxu0 %v463
    %503 = vmatprep.subr.bf16.mxu0 %v462
    %504 = vmatpush1.bf16.msra.mxu0 %v461
    %505 = vmatprep.subr.bf16.mxu0 %v460
    %506 = vmatpush1.bf16.msra.mxu0 %v459
    %507 = vmatprep.subr.bf16.mxu0 0
    %508 = vmatpush2.bf16.msra.mxu0 0
    %509 = vmatprep.subr.bf16.mxu0 0
    %510 = vmatpush2.bf16.msra.mxu0 0
    %511 = vmatprep.subr.bf16.mxu0 0
    %512 = vmatpush2.bf16.msra.mxu0 0
    %513 = vmatprep.subr.bf16.mxu0 0
    %514 = vmatpush2.bf16.msra.mxu0 0
    %515 = vmatprep.subr.bf16.mxu0 0
    %516 = vmatpush2.bf16.msra.mxu0 0
    %517 = vmatprep.subr.bf16.mxu0 0
    %518 = vmatpush2.bf16.msra.mxu0 0
    %519 = vmatprep.subr.bf16.mxu0 0
    %520 = vmatpush2.bf16.msra.mxu0 0
    %521 = vmatprep.subr.bf16.mxu0 0
    %522 = vmatpush2.bf16.msra.mxu0 0
    %523 = vmatprep.mubr.bf16.mxu0 0
    %524 = vmatmul.mubr.bf16.gmra.mxu0 %v410
    %v525 = vpop.f32.mrf.mxu0
    %v526 = vadd.f32 0.0, %v525
    %v527 = vpop.f32.mrf.mxu0
    %v528 = vadd.f32 0.0, %v527
    %v529 = vpop.f32.mrf.mxu0
    %v530 = vpop.f32.mrf.mxu0
    %531 = vdwg.mxu0
    %v532 = vpack.c.bf16 %v526, %v526
    %v533 = vpack.c.bf16 %v528, %v528
    %v536 = vunpack.c.l.s4 1966171168
    %v537 = vunpack.c.0.s8 %v536
    %v538 = vlaneseq
    %v539 = vshrl.u32 %v538, 7
    %v540 = vsub.s32 %v537, %v539
    %v541 = vrot.slane %v241, %v540
    %v542 = vcombine.high %v541, %v541
    %v544 = vunpack.c.l.s4 1966171168
    %v545 = vunpack.c.0.s8 %v544
    %v546 = vlaneseq
    %v547 = vshrl.u32 %v546, 7
    %v548 = vsub.s32 %v545, %v547
    %v549 = vrot.slane %v541, %v548
    %v551 = vunpack.c.l.s4 1966171168
    %v552 = vunpack.c.0.s8 %v551
    %v553 = vlaneseq
    %v554 = vshrl.u32 %v553, 7
    %v555 = vsub.s32 %v552, %v554
    %v556 = vrot.slane %v542, %v555
    %v558 = vpack.i.b16 %v549, %v549
    %v560 = vlaneseq
    %v561 = vshrl.u32 %v560, 7
    %v562 = vsub.s32 0, %v561
    %v563 = vrot.slane %v558, %v562
    %v565 = vpack.i.b16 %v556, %v556
    %v567 = vlaneseq
    %v568 = vshrl.u32 %v567, 7
    %v569 = vsub.s32 0, %v568
    %v570 = vrot.slane %v565, %v569
    %v571 = vadd.bf16 %v532, %v563
    %v572 = vadd.bf16 %v533, %v570
    %v573 = vmax.bf16 %v571, 0
    %v574 = vmax.bf16 %v572, 0
    %v607 = vunpack.c.l.b16 %v175
    %v608 = vunpack.c.l.b16 %v176
    %v609 = vunpack.c.l.b16 %v177
    %v610 = vunpack.c.l.b16 %v178
    %v611 = vunpack.c.l.b16 %v179
    %v612 = vunpack.c.l.b16 %v180
    %v613 = vunpack.c.l.b16 %v181
    %v614 = vunpack.c.l.b16 %v182
    %v615 = vunpack.c.l.b16 %v183
    %v616 = vunpack.c.l.b16 %v184
    %v617 = vunpack.c.l.b16 %v185
    %v618 = vunpack.c.l.b16 %v186
    %v619 = vunpack.c.l.b16 %v187
    %v620 = vunpack.c.l.b16 %v188
    %v621 = vunpack.c.l.b16 %v189
    %v622 = vunpack.c.l.b16 %v190
    %v623 = vunpack.c.l.b16 %v191
    %v624 = vunpack.c.l.b16 %v192
    %v625 = vunpack.c.l.b16 %v193
    %v626 = vunpack.c.l.b16 %v194
    %v627 = vunpack.c.l.b16 %v195
    %v628 = vunpack.c.l.b16 %v196
    %v629 = vunpack.c.l.b16 %v197
    %v630 = vunpack.c.l.b16 %v198
    %v631 = vunpack.c.l.b16 %v199
    %v632 = vunpack.c.l.b16 %v200
    %v633 = vunpack.c.l.b16 %v201
    %v634 = vunpack.c.l.b16 %v202
    %v635 = vunpack.c.l.b16 %v203
    %v636 = vunpack.c.l.b16 %v204
    %v637 = vunpack.c.l.b16 %v205
    %v638 = vunpack.c.l.b16 %v206
    %v639 = vpack.c.b16 %v608, %v607
    %v640 = vpack.c.b16 %v610, %v609
    %v641 = vpack.c.b16 %v612, %v611
    %v642 = vpack.c.b16 %v614, %v613
    %v643 = vpack.c.b16 %v616, %v615
    %v644 = vpack.c.b16 %v618, %v617
    %v645 = vpack.c.b16 %v620, %v619
    %v646 = vpack.c.b16 %v622, %v621
    %v647 = vpack.c.b16 %v624, %v623
    %v648 = vpack.c.b16 %v626, %v625
    %v649 = vpack.c.b16 %v628, %v627
    %v650 = vpack.c.b16 %v630, %v629
    %v651 = vpack.c.b16 %v632, %v631
    %v652 = vpack.c.b16 %v634, %v633
    %v653 = vpack.c.b16 %v636, %v635
    %v654 = vpack.c.b16 %v638, %v637
    %671 = vmatprep.subr.bf16.mxu0 0
    %672 = vmatpush1.bf16.msra.mxu0 %v646
    %673 = vmatprep.subr.bf16.mxu0 0
    %674 = vmatpush1.bf16.msra.mxu0 %v645
    %675 = vmatprep.subr.bf16.mxu0 0
    %676 = vmatpush1.bf16.msra.mxu0 %v644
    %677 = vmatprep.subr.bf16.mxu0 0
    %678 = vmatpush1.bf16.msra.mxu0 %v643
    %679 = vmatprep.subr.bf16.mxu0 0
    %680 = vmatpush1.bf16.msra.mxu0 %v642
    %681 = vmatprep.subr.bf16.mxu0 0
    %682 = vmatpush1.bf16.msra.mxu0 %v641
    %683 = vmatprep.subr.bf16.mxu0 0
    %684 = vmatpush1.bf16.msra.mxu0 %v640
    %685 = vmatprep.subr.bf16.mxu0 0
    %686 = vmatpush1.bf16.msra.mxu0 %v639
    %687 = vmatprep.subr.bf16.mxu0 0
    %688 = vmatpush2.bf16.msra.mxu0 %v654
    %689 = vmatprep.subr.bf16.mxu0 0
    %690 = vmatpush2.bf16.msra.mxu0 %v653
    %691 = vmatprep.subr.bf16.mxu0 0
    %692 = vmatpush2.bf16.msra.mxu0 %v652
    %693 = vmatprep.subr.bf16.mxu0 0
    %694 = vmatpush2.bf16.msra.mxu0 %v651
    %695 = vmatprep.subr.bf16.mxu0 0
    %696 = vmatpush2.bf16.msra.mxu0 %v650
    %697 = vmatprep.subr.bf16.mxu0 0
    %698 = vmatpush2.bf16.msra.mxu0 %v649
    %699 = vmatprep.subr.bf16.mxu0 0
    %700 = vmatpush2.bf16.msra.mxu0 %v648
    %701 = vmatprep.subr.bf16.mxu0 0
    %702 = vmatpush2.bf16.msra.mxu0 %v647
    %703 = vmatprep.mubr.bf16.mxu0 %v574
    %704 = vmatmul.mubr.bf16.gmra.mxu0 %v573
    %v705 = vpop.f32.mrf.mxu0
    %v706 = vadd.f32 0.0, %v705
    %v707 = vpop.f32.mrf.mxu0
    %v708 = vpop.f32.mrf.mxu0
    %v709 = vpop.f32.mrf.mxu0
    %710 = vdwg.mxu0
    %v711 = vpack.c.bf16 %v706, %v706
    %v713 = vpack.i.b16 %v242, %v242
    %v715 = vlaneseq
    %v716 = vshrl.u32 %v715, 7
    %v717 = vsub.s32 0, %v716
    %v718 = vrot.slane %v713, %v717
    %v719 = vadd.bf16 %v711, %v718
    %v720 = vmax.bf16 %v719, 0
    %v737 = vunpack.c.l.b16 %v207
    %v738 = vunpack.c.l.b16 %v208
    %v739 = vunpack.c.l.b16 %v209
    %v740 = vunpack.c.l.b16 %v210
    %v741 = vunpack.c.l.b16 %v211
    %v742 = vunpack.c.l.b16 %v212
    %v743 = vunpack.c.l.b16 %v213
    %v744 = vunpack.c.l.b16 %v214
    %v745 = vunpack.c.l.b16 %v215
    %v746 = vunpack.c.l.b16 %v216
    %v747 = vunpack.c.l.b16 %v217
    %v748 = vunpack.c.l.b16 %v218
    %v749 = vunpack.c.l.b16 %v219
    %v750 = vunpack.c.l.b16 %v220
    %v751 = vunpack.c.l.b16 %v221
    %v752 = vunpack.c.l.b16 %v222
    %v753 = vpack.c.b16 %v738, %v737
    %v754 = vpack.c.b16 %v740, %v739
    %v755 = vpack.c.b16 %v742, %v741
    %v756 = vpack.c.b16 %v744, %v743
    %v757 = vpack.c.b16 %v746, %v745
    %v758 = vpack.c.b16 %v748, %v747
    %v759 = vpack.c.b16 %v750, %v749
    %v760 = vpack.c.b16 %v752, %v751
    %769 = vmatprep.subr.bf16.mxu0 0
    %770 = vmatpush1.bf16.msra.mxu0 %v760
    %771 = vmatprep.subr.bf16.mxu0 0
    %772 = vmatpush1.bf16.msra.mxu0 %v759
    %773 = vmatprep.subr.bf16.mxu0 0
    %774 = vmatpush1.bf16.msra.mxu0 %v758
    %775 = vmatprep.subr.bf16.mxu0 0
    %776 = vmatpush1.bf16.msra.mxu0 %v757
    %777 = vmatprep.subr.bf16.mxu0 0
    %778 = vmatpush1.bf16.msra.mxu0 %v756
    %779 = vmatprep.subr.bf16.mxu0 0
    %780 = vmatpush1.bf16.msra.mxu0 %v755
    %781 = vmatprep.subr.bf16.mxu0 0
    %782 = vmatpush1.bf16.msra.mxu0 %v754
    %783 = vmatprep.subr.bf16.mxu0 0
    %784 = vmatpush1.bf16.msra.mxu0 %v753
    %785 = vmatprep.subr.bf16.mxu0 0
    %786 = vmatpush2.bf16.msra.mxu0 0
    %787 = vmatprep.subr.bf16.mxu0 0
    %788 = vmatpush2.bf16.msra.mxu0 0
    %789 = vmatprep.subr.bf16.mxu0 0
    %790 = vmatpush2.bf16.msra.mxu0 0
    %791 = vmatprep.subr.bf16.mxu0 0
    %792 = vmatpush2.bf16.msra.mxu0 0
    %793 = vmatprep.subr.bf16.mxu0 0
    %794 = vmatpush2.bf16.msra.mxu0 0
    %795 = vmatprep.subr.bf16.mxu0 0
    %796 = vmatpush2.bf16.msra.mxu0 0
    %797 = vmatprep.subr.bf16.mxu0 0
    %798 = vmatpush2.bf16.msra.mxu0 0
    %799 = vmatprep.subr.bf16.mxu0 0
    %800 = vmatpush2.bf16.msra.mxu0 0
    %801 = vmatprep.mubr.bf16.mxu0 0
    %802 = vmatmul.mubr.bf16.gmra.mxu0 %v720
    %v803 = vpop.f32.mrf.mxu0
    %v804 = vadd.f32 0.0, %v803
    %v805 = vpop.f32.mrf.mxu0
    %v806 = vpop.f32.mrf.mxu0
    %v807 = vpop.f32.mrf.mxu0
    %808 = vdwg.mxu0
    %v809 = vpack.c.bf16 %v804, %v804
    %v811 = vpack.i.b16 %v243, %v243
    %v813 = vlaneseq
    %v814 = vshrl.u32 %v813, 7
    %v815 = vsub.s32 0, %v814
    %v816 = vrot.slane %v811, %v815
    %v817 = vadd.bf16 %v809, %v816
    %v818 = vmax.bf16 %v817, 0
    %v820 = vlaneseq
    %v821 = vshrl.u32 %v820, 7
    %v822 = vsub.s32 0, %v821
    %v823 = vrot.slane %v244, %v822
    %v841 = vunpack.c.l.b16 %v223
    %v842 = vunpack.c.l.b16 %v224
    %v843 = vunpack.c.l.b16 %v225
    %v844 = vunpack.c.l.b16 %v226
    %v845 = vunpack.c.l.b16 %v227
    %v846 = vunpack.c.l.b16 %v228
    %v847 = vunpack.c.l.b16 %v229
    %v848 = vunpack.c.l.b16 %v230
    %v849 = vunpack.c.l.b16 %v231
    %v850 = vunpack.c.l.b16 %v232
    %v851 = vunpack.c.l.b16 %v233
    %v852 = vunpack.c.l.b16 %v234
    %v853 = vunpack.c.l.b16 %v235
    %v854 = vunpack.c.l.b16 %v236
    %v855 = vunpack.c.l.b16 %v237
    %v856 = vunpack.c.l.b16 %v238
    %v857 = vpack.c.b16 %v842, %v841
    %v858 = vpack.c.b16 %v844, %v843
    %v859 = vpack.c.b16 %v846, %v845
    %v860 = vpack.c.b16 %v848, %v847
    %v861 = vpack.c.b16 %v850, %v849
    %v862 = vpack.c.b16 %v852, %v851
    %v863 = vpack.c.b16 %v854, %v853
    %v864 = vpack.c.b16 %v856, %v855
    %873 = vmatprep.subr.bf16.mxu0 0
    %874 = vmatpush1.bf16.msra.mxu0 %v864
    %875 = vmatprep.subr.bf16.mxu0 0
    %876 = vmatpush1.bf16.msra.mxu0 %v863
    %877 = vmatprep.subr.bf16.mxu0 0
    %878 = vmatpush1.bf16.msra.mxu0 %v862
    %879 = vmatprep.subr.bf16.mxu0 0
    %880 = vmatpush1.bf16.msra.mxu0 %v861
    %881 = vmatprep.subr.bf16.mxu0 0
    %882 = vmatpush1.bf16.msra.mxu0 %v860
    %883 = vmatprep.subr.bf16.mxu0 0
    %884 = vmatpush1.bf16.msra.mxu0 %v859
    %885 = vmatprep.subr.bf16.mxu0 0
    %886 = vmatpush1.bf16.msra.mxu0 %v858
    %887 = vmatprep.subr.bf16.mxu0 0
    %888 = vmatpush1.bf16.msra.mxu0 %v857
    %889 = vmatprep.subr.bf16.mxu0 0
    %890 = vmatpush2.bf16.msra.mxu0 0
    %891 = vmatprep.subr.bf16.mxu0 0
    %892 = vmatpush2.bf16.msra.mxu0 0
    %893 = vmatprep.subr.bf16.mxu0 0
    %894 = vmatpush2.bf16.msra.mxu0 0
    %895 = vmatprep.subr.bf16.mxu0 0
    %896 = vmatpush2.bf16.msra.mxu0 0
    %897 = vmatprep.subr.bf16.mxu0 0
    %898 = vmatpush2.bf16.msra.mxu0 0
    %899 = vmatprep.subr.bf16.mxu0 0
    %900 = vmatpush2.bf16.msra.mxu0 0
    %901 = vmatprep.subr.bf16.mxu0 0
    %902 = vmatpush2.bf16.msra.mxu0 0
    %903 = vmatprep.subr.bf16.mxu0 0
    %904 = vmatpush2.bf16.msra.mxu0 0
    %905 = vmatprep.mubr.bf16.mxu0 0
    %906 = vmatmul.mubr.bf16.gmra.mxu0 %v818
    %v907 = vpop.f32.mrf.mxu0
    %v908 = vadd.f32 %v823, %v907
    %v909 = vpop.f32.mrf.mxu0
    %v910 = vpop.f32.mrf.mxu0
    %v911 = vpop.f32.mrf.mxu0
    %912 = vdwg.mxu0
    %913 = vmax.xlane.f32.xlu0 %v908
    %v914 = vpop.xlane.xlu0 %913
    %v915 = vsub.f32 %v908, %v914
    %v916 = vmul.f32 %v915, 1.442695
    %v917 = vpow.pop %v916
    %918 = vadd.xlane.f32.xlu0 %v917
    %v919 = vpop.xlane.xlu0 %918
    %v920 = vrcp.pop %v919
    %v921 = vmul.f32 %v917, %v920
    %922 = vst [vmem:[#allocation14] sm:$0xff] %v921
    // Predicated region
    $region82: #{tpu_custom_call.1} parent=1 // pred_check
      _
    $region83: #{tpu_custom_call.1} parent=1 // pred_check_branch
      %924 = sbr.rel (0) target = $region85
    $region84: #{tpu_custom_call.1} parent=1 // pred_region
      %s926 = ssub.s32 128, 128
      %927 = vsyncadd [#allocation4], %s926
      %s929 = sshll.u32 [#allocation14], 4
      %s930 = int_to_ptr.vmem [resolvable:$true] %s929
      %932 = dma.vmem_to_hbm [thread:$0]  %s930, 128, %s13, [#allocation4]
    $region85: #{tpu_custom_call.1} parent=1 // pred_fallthru
      _
    // Predicated region
    $region86: #{tpu_custom_call.1} parent=1 // pred_check
      _
    $region87: #{tpu_custom_call.1} parent=1 // pred_check_branch
      %934 = sbr.rel (0) target = $region89
    $region88: #{tpu_custom_call.1} parent=1 // pred_region
      %935 = dma.done [#allocation4], 128
    $region89: #{tpu_custom_call.1} parent=1 // pred_fallthru
      _
    %936 = vsyncpa [#allocation3], 1
    %937 = vsyncpa [#allocation6], 1
    %938 = vsyncpa [#allocation9], 1
    %939 = vsyncpa [#allocation12], 1
    %940 = vsyncpa [#allocation4], 1

</llo_original>
